<compile_context>
chip_gen: v6e
topology: v6e:2x2x1
jax: 0.10.0
libtpu: 0.0.40
codegen_flags: <defaults>
</compile_context>

<pallas_src>
from functools import partial

import jax
import jax.numpy as jnp
from jax.experimental import pallas as pl
from jax.experimental.pallas import tpu as pltpu


def _sigmoid(z):
    # Mathematically exact sigmoid; single EUP tanh instead of exp+recip.
    return 0.5 * jnp.tanh(0.5 * z) + 0.5


def decoder_small_kernel(x_ref, w_ref, b_ref, o_ref):
    """Single-block path: whole problem lives in VMEM."""
    z = jnp.dot(x_ref[...], w_ref[...], preferred_element_type=jnp.float32)
    o_ref[...] = _sigmoid(z + b_ref[...]).astype(o_ref.dtype)


def decoder_tile_kernel(x_ref, w_ref, b_ref, o_ref, *, mxu_dtype):
    """One (tm, tn) output tile; K reduction runs over grid axis 2.

    Accumulates directly into the resident f32 output block (no scratch).
    """
    k = pl.program_id(2)

    @pl.when(k == 0)
    def _():
        o_ref[...] = jnp.zeros_like(o_ref)

    o_ref[...] += jnp.dot(
        x_ref[...].astype(mxu_dtype),
        w_ref[...].astype(mxu_dtype),
        preferred_element_type=jnp.float32,
    )

    @pl.when(k == pl.num_programs(2) - 1)
    def _():
        # Bias add (VPU) + sigmoid (EUP) fused into the finalize, f32 math.
        o_ref[...] = _sigmoid(o_ref[...] + b_ref[...]).astype(o_ref.dtype)


def _round_up(x, m):
    return ((x + m - 1) // m) * m


def decoder_forward(x, w_t, bias, *, tm=512, tn=512, tk=1024,
                    mxu_dtype=jnp.bfloat16):
    """x: (B, In), w_t: (In, Out) [= Linear weight transposed once at init],
    bias: (Out,).  Returns sigmoid(x @ w_t + bias) as (B, Out) float32.

    mxu_dtype=jnp.bfloat16 feeds the MXU its native path (f32 accumulation);
    pass jnp.float32 for bit-accurate f32 matmul.
    """
    B, In = x.shape
    K2, Out = w_t.shape
    assert K2 == In, "weight must be pre-transposed to (In, Out)"

    # ---- Fast path for module-sized problems: one block, no grid/pad. ----
    if B <= 64 and In <= 512 and Out <= 512:
        return pl.pallas_call(
            decoder_small_kernel,
            out_shape=jax.ShapeDtypeStruct((B, Out), jnp.float32),
        )(x, w_t, bias.reshape(1, Out))

    # ---- Tiled (M, N, K) path. ----
    Mp8 = _round_up(B, 8)
    tm = min(tm, Mp8)
    # v7x has 2 TensorCores: keep >= 2 blocks on the parallel M axis once the
    # problem is big enough so both cores get work.
    if Mp8 >= 512:
        tm = min(tm, _round_up(Mp8 // 2, 8))
    tn = min(tn, _round_up(Out, 128))
    tk = min(tk, _round_up(In, 128))

    Mp = _round_up(B, tm)
    Np = _round_up(Out, tn)
    Kp = _round_up(In, tk)

    # Pad only when required (K tail must be zero for the reduction; M/N pads
    # keep BlockSpec alignment).  Aligned shapes take the zero-copy path.
    xp = x if (Mp == B and Kp == In) else jnp.pad(x, ((0, Mp - B), (0, Kp - In)))
    wp = (
        w_t
        if (Kp == In and Np == Out)
        else jnp.pad(w_t, ((0, Kp - In), (0, Np - Out)))
    )
    bp = (bias if Np == Out else jnp.pad(bias, (0, Np - Out))).reshape(1, Np)

    grid = (Mp // tm, Np // tn, Kp // tk)

    out_padded = pl.pallas_call(
        partial(decoder_tile_kernel, mxu_dtype=mxu_dtype),
        out_shape=jax.ShapeDtypeStruct((Mp, Np), jnp.float32),
        grid=grid,
        in_specs=[
            pl.BlockSpec((tm, tk), lambda i, j, k: (i, k)),   # X tile
            pl.BlockSpec((tk, tn), lambda i, j, k: (k, j)),   # W tile
            pl.BlockSpec((1, tn), lambda i, j, k: (0, j)),    # bias tile
        ],
        out_specs=pl.BlockSpec((tm, tn), lambda i, j, k: (i, j)),
        compiler_params=pltpu.CompilerParams(
            dimension_semantics=("parallel", "parallel", "arbitrary"),
            vmem_limit_bytes=48 * 1024 * 1024,
        ),
    )(xp, wp, bp)

    if Mp == B and Np == Out:
        return out_padded
    return out_padded[:B, :Out]


def xavier_uniform(key, fan_out, fan_in, dtype=jnp.float32):
    # Matches nn.init.xavier_uniform_ for a (fan_out, fan_in) Linear weight.
    limit = jnp.sqrt(6.0 / (fan_in + fan_out))
    return jax.random.uniform(key, (fan_out, fan_in), dtype, -limit, limit)


if __name__ == "__main__":
    key = jax.random.PRNGKey(0)

    # --- Small case (module-sized): exercises the single-block fast path. ---
    k_x, k_w, k_b = jax.random.split(key, 3)
    batch, layer_in, layer_out = 8, 32, 16

    x = jax.random.normal(k_x, (batch, layer_in), jnp.float32)
    w = xavier_uniform(k_w, layer_out, layer_in)              # (Out, In)
    bound = 1.0 / jnp.sqrt(jnp.float32(layer_in))
    b = jax.random.uniform(k_b, (layer_out,), jnp.float32, -bound, bound)

    w_t = w.T  # one-time init-style transpose (not per forward call)
    out = jax.block_until_ready(decoder_forward(x, w_t, b))
    ref = jax.nn.sigmoid(x @ w_t + b)
    assert out.shape == (batch, layer_out)
    assert jnp.allclose(out, ref, atol=1e-5, rtol=1e-5)

    # --- Larger case: exercises the real (M, N, K) grid + in-place accum. ---
    k_x2, k_w2, k_b2 = jax.random.split(jax.random.PRNGKey(1), 3)
    B2, In2, Out2 = 512, 1024, 384
    x2 = jax.random.normal(k_x2, (B2, In2), jnp.float32)
    w2 = xavier_uniform(k_w2, Out2, In2)
    bound2 = 1.0 / jnp.sqrt(jnp.float32(In2))
    b2 = jax.random.uniform(k_b2, (Out2,), jnp.float32, -bound2, bound2)
    w2_t = w2.T

    ref2 = jax.nn.sigmoid(x2 @ w2_t + b2)

    # Exact-f32 MXU path.
    out2_f32 = jax.block_until_ready(
        decoder_forward(x2, w2_t, b2, mxu_dtype=jnp.float32))
    assert out2_f32.shape == (B2, Out2)
    assert jnp.allclose(out2_f32, ref2, atol=1e-4, rtol=1e-4)

    # Default bf16-operand MXU path (f32 accumulation) — relaxed tolerance.
    out2_bf16 = jax.block_until_ready(decoder_forward(x2, w2_t, b2))
    assert out2_bf16.shape == (B2, Out2)
    assert jnp.allclose(out2_bf16, ref2, atol=2e-2, rtol=2e-2)

    print("KERNEL_OK")
</pallas_src>

<mosaic_0001>
module attributes {stable_mosaic.version = 11 : i64} {
  func.func @decoder_small_kernel(%arg0: memref<8x32xf32, #tpu.memory_space<vmem>>, %arg1: memref<32x16xf32, #tpu.memory_space<vmem>>, %arg2: memref<1x16xf32, #tpu.memory_space<vmem>>, %arg3: memref<8x16xf32, #tpu.memory_space<vmem>>) attributes {dimension_semantics = [], scalar_prefetch = 0 : i64, scratch_operands = 0 : i64, tpu.core_type = #tpu.core_type<tc>} {
    %c0 = arith.constant 0 : index
    %c0_0 = arith.constant 0 : index
    %0 = vector.load %arg0[%c0, %c0_0] : memref<8x32xf32, #tpu.memory_space<vmem>>, vector<8x32xf32>
    %c0_1 = arith.constant 0 : index
    %c0_2 = arith.constant 0 : index
    %1 = vector.load %arg1[%c0_1, %c0_2] : memref<32x16xf32, #tpu.memory_space<vmem>>, vector<32x16xf32>
    %cst = arith.constant dense<0.000000e+00> : vector<8x16xf32>
    %2 = tpu.matmul %0, %1, %cst {dimension_numbers = #tpu.dot_dimension_numbers<[1], [0], [0], [1], [0, 0, 1, 1], [], []>} : vector<8x32xf32>, vector<32x16xf32>, vector<8x16xf32> -> vector<8x16xf32>
    %c0_3 = arith.constant 0 : index
    %c0_4 = arith.constant 0 : index
    %3 = vector.load %arg2[%c0_3, %c0_4] : memref<1x16xf32, #tpu.memory_space<vmem>>, vector<1x16xf32>
    %4 = vector.broadcast %3 : vector<1x16xf32> to vector<8x16xf32>
    %5 = arith.addf %2, %4 : vector<8x16xf32>
    %cst_5 = arith.constant 5.000000e-01 : f32
    %6 = vector.broadcast %cst_5 : f32 to vector<8x16xf32>
    %7 = arith.mulf %6, %5 : vector<8x16xf32>
    %8 = math.tanh %7 : vector<8x16xf32>
    %cst_6 = arith.constant 5.000000e-01 : f32
    %9 = vector.broadcast %cst_6 : f32 to vector<8x16xf32>
    %10 = arith.mulf %9, %8 : vector<8x16xf32>
    %cst_7 = arith.constant 5.000000e-01 : f32
    %11 = vector.broadcast %cst_7 : f32 to vector<8x16xf32>
    %12 = arith.addf %10, %11 : vector<8x16xf32>
    %c0_8 = arith.constant 0 : index
    %c0_9 = arith.constant 0 : index
    %13 = vector.load %arg3[%c0_8, %c0_9] : memref<8x16xf32, #tpu.memory_space<vmem>>, vector<8x16xf32>
    tpu.vector_store %arg3[%c0_8, %c0_9], %12 {strides = array<i32>} : memref<8x16xf32, #tpu.memory_space<vmem>>, vector<8x16xf32>,
    return
  }
}

</mosaic_0001>

<llo_original>
// kernel: tpu_custom_call.1
$region0: #{tpu_custom_call.1}
  #allocation0 [shape = 'u32[]', space=smem, size = 0x4, offset = 0x4, fixed_abs, tag = 'smem constant byte address 0x4 - core index']
  #allocation1 [shape = 'u32[144,128]{1,0:T(1,128)}', space=vmem, size = 0x12000, scoped, tag = 'internal scratch']
  %s0 = inlined_call_operand.vmem [shape: f32[8,32], index: 0, kind: input, shape index: {}]
  %s1 = inlined_call_operand.vmem [shape: f32[32,16], index: 1, kind: input, shape index: {}]
  %s2 = inlined_call_operand.vmem [shape: f32[1,16], index: 2, kind: input, shape index: {}]
  %s3 = inlined_call_operand.hbm [shape: f32[8,16], index: 3, kind: output, shape index: {}]
  %s4 = sld [smem:[#allocation0]]
  $region22: #{tpu_custom_call.1} parent=0
    _
  %s6 = ssub.s32 1, %s4
  %s7 = scalar_select 0, %s6, %s4
  $region1: #{tpu_custom_call.1} parent=0
    #allocation2 [shape = 'u8[4096]{0}', space=vmem, size = 0x1000, scoped, tag = 'output window, operand 0, single buffered']
    #allocation3 [shape = 's32[1]{0}', space=sflag, size = 0x4, scoped, tag = 'scoped memory for tpu_custom_call.1']
    %8 = vsyncpa [#allocation3], 0
    // Predicated region
    $region2: #{tpu_custom_call.1} parent=1 // pred_check
      _
    $region3: #{tpu_custom_call.1} parent=1 // pred_check_branch
      %10 = sbr.rel (0) target = $region5
    $region4: #{tpu_custom_call.1} parent=1 // pred_region
      _
    $region5: #{tpu_custom_call.1} parent=1 // pred_fallthru
      _
    // Predicated region
    $region6: #{tpu_custom_call.1} parent=1 // pred_check
      _
    $region7: #{tpu_custom_call.1} parent=1 // pred_check_branch
      %12 = sbr.rel (0) target = $region9
    $region8: #{tpu_custom_call.1} parent=1 // pred_region
      _
    $region9: #{tpu_custom_call.1} parent=1 // pred_fallthru
      _
    // Predicated region
    $region10: #{tpu_custom_call.1} parent=1 // pred_check
      _
    $region11: #{tpu_custom_call.1} parent=1 // pred_check_branch
      %14 = sbr.rel (0) target = $region13
    $region12: #{tpu_custom_call.1} parent=1 // pred_region
      _
    $region13: #{tpu_custom_call.1} parent=1 // pred_fallthru
      _
    %v15 = vld [vmem:[%s0] sm:$0xff]
    %v16 = vld [vmem:[%s1] sm:$0xff]
    %v17 = vld [vmem:[%s1 + $0x8] sm:$0xff]
    %v18 = vld [vmem:[%s1 + $0x10] sm:$0xff]
    %v19 = vld [vmem:[%s1 + $0x18] sm:$0xff]
    %v20 = vld [vmem:[%s2] sm:$0x1]
    %v22 = vlaneseq
    %v23 = vshrl.u32 %v22, 7
    %v24 = vsub.s32 0, %v23
    %v25 = vrot.slane %v20, %v24
    %vm27 = vcmask 261120
    %v29 = vsel %vm27, %v15, 0
    %31 = vmatprep.subr.mxu0 0.0
    %32 = vmatpush1.msra.mxu0 0.0
    %33 = vmatprep.subr.mxu0 0.0
    %34 = vmatpush1.msra.mxu0 0.0
    %35 = vmatprep.subr.mxu0 0.0
    %36 = vmatpush1.msra.mxu0 0.0
    %37 = vmatprep.subr.mxu0 0.0
    %38 = vmatpush1.msra.mxu0 0.0
    %39 = vmatprep.subr.mxu0 0.0
    %40 = vmatpush1.msra.mxu0 0.0
    %41 = vmatprep.subr.mxu0 0.0
    %42 = vmatpush1.msra.mxu0 0.0
    %43 = vmatprep.subr.mxu0 0.0
    %44 = vmatpush1.msra.mxu0 0.0
    %45 = vmatprep.subr.mxu0 0.0
    %46 = vmatpush1.msra.mxu0 0.0
    %47 = vmatprep.subr.mxu0 0.0
    %48 = vmatpush1.msra.mxu0 0.0
    %49 = vmatprep.subr.mxu0 0.0
    %50 = vmatpush1.msra.mxu0 0.0
    %51 = vmatprep.subr.mxu0 0.0
    %52 = vmatpush1.msra.mxu0 0.0
    %53 = vmatprep.subr.mxu0 0.0
    %54 = vmatpush1.msra.mxu0 0.0
    %55 = vmatprep.subr.mxu0 0.0
    %56 = vmatpush1.msra.mxu0 %v19
    %57 = vmatprep.subr.mxu0 0.0
    %58 = vmatpush1.msra.mxu0 %v18
    %59 = vmatprep.subr.mxu0 0.0
    %60 = vmatpush1.msra.mxu0 %v17
    %61 = vmatprep.subr.mxu0 0.0
    %62 = vmatpush1.msra.mxu0 %v16
    %63 = vmatprep.subr.mxu0 0.0
    %64 = vmatpush2.msra.mxu0 0.0
    %65 = vmatprep.subr.mxu0 0.0
    %66 = vmatpush2.msra.mxu0 0.0
    %67 = vmatprep.subr.mxu0 0.0
    %68 = vmatpush2.msra.mxu0 0.0
    %69 = vmatprep.subr.mxu0 0.0
    %70 = vmatpush2.msra.mxu0 0.0
    %71 = vmatprep.subr.mxu0 0.0
    %72 = vmatpush2.msra.mxu0 0.0
    %73 = vmatprep.subr.mxu0 0.0
    %74 = vmatpush2.msra.mxu0 0.0
    %75 = vmatprep.subr.mxu0 0.0
    %76 = vmatpush2.msra.mxu0 0.0
    %77 = vmatprep.subr.mxu0 0.0
    %78 = vmatpush2.msra.mxu0 0.0
    %79 = vmatprep.subr.mxu0 0.0
    %80 = vmatpush2.msra.mxu0 0.0
    %81 = vmatprep.subr.mxu0 0.0
    %82 = vmatpush2.msra.mxu0 0.0
    %83 = vmatprep.subr.mxu0 0.0
    %84 = vmatpush2.msra.mxu0 0.0
    %85 = vmatprep.subr.mxu0 0.0
    %86 = vmatpush2.msra.mxu0 0.0
    %87 = vmatprep.subr.mxu0 0.0
    %88 = vmatpush2.msra.mxu0 0.0
    %89 = vmatprep.subr.mxu0 0.0
    %90 = vmatpush2.msra.mxu0 0.0
    %91 = vmatprep.subr.mxu0 0.0
    %92 = vmatpush2.msra.mxu0 0.0
    %93 = vmatprep.subr.mxu0 0.0
    %94 = vmatpush2.msra.mxu0 0.0
    %95 = vmatprep.mubr.f32.mxu0 0.0
    %96 = vmatmul.mubr.f32.gmra.mxu0 %v29
    %v97 = vpop.f32.mrf.mxu0
    %v98 = vadd.f32 %v25, %v97
    %v99 = vpop.f32.mrf.mxu0
    %100 = vdwg.mxu0
    %v101 = vmul.f32 %v98, 0.5
    %v102 = vtanh.pop %v101
    %v103 = vmul.f32 %v102, 0.5
    %v104 = vadd.f32 %v103, 0.5
    %vm105 = vcmask 130048
    %106 = vst.msk [vmem:[#allocation2] sm:$0xff] %vm105, %v104
    // Predicated region
    $region14: #{tpu_custom_call.1} parent=1 // pred_check
      _
    $region15: #{tpu_custom_call.1} parent=1 // pred_check_branch
      %108 = sbr.rel (0) target = $region17
    $region16: #{tpu_custom_call.1} parent=1 // pred_region
      %s110 = ssub.s32 128, 128
      %111 = vsyncadd [#allocation3], %s110
      %s113 = sshll.u32 [#allocation2], 4
      %s114 = int_to_ptr.vmem [resolvable:$true] %s113
      %116 = dma.vmem_to_hbm [thread:$0]  %s114, 128, %s3, [#allocation3]
    $region17: #{tpu_custom_call.1} parent=1 // pred_fallthru
      _
    // Predicated region
    $region18: #{tpu_custom_call.1} parent=1 // pred_check
      _
    $region19: #{tpu_custom_call.1} parent=1 // pred_check_branch
      %118 = sbr.rel (0) target = $region21
    $region20: #{tpu_custom_call.1} parent=1 // pred_region
      %119 = dma.done [#allocation3], 128
    $region21: #{tpu_custom_call.1} parent=1 // pred_fallthru
      _
    %120 = vsyncpa [#allocation3], 1

</llo_original>
